<compile_context>
chip_gen: v6e
topology: v6e:2x2x1
jax: 0.10.0
libtpu: 0.0.40
codegen_flags: <defaults>
</compile_context>

<pallas_src>
import functools

import jax
import jax.numpy as jnp
from jax.experimental import pallas as pl
from jax.experimental.pallas import tpu as pltpu

_LANE = 128            # vreg lane width (internal hidden-dim padding only)
_SUBLANE = 8           # f32 sublane count (row-tile granularity)
_BATCH_TILE = 1024     # max rows per grid step (feature dims are tiny)
_GRID_THRESHOLD = 256  # below this batch, a single grid-less invocation
_VMEM_BUDGET = 12 * 1024 * 1024  # conservative: under v5e's 16 MiB scoped default


def _round_up(n, m):
    return ((n + m - 1) // m) * m


def _cdiv(a, b):
    return (a + b - 1) // b


def _fused_mlp_kernel(*refs, n_layers):
    """out = Linear_n(ReLU(Linear_{n-1}(... ReLU(Linear_1(x)) ...)))

    refs = (x, w1, b1, w2, b2, ..., wn, bn, out).  All operands are
    VMEM-resident; intermediate activations stay in VMEM (never HBM).
    """
    x_ref = refs[0]
    o_ref = refs[-1]
    h = x_ref[...]
    for i in range(n_layers):
        w_ref = refs[1 + 2 * i]
        b_ref = refs[2 + 2 * i]
        h = jnp.dot(h, w_ref[...], preferred_element_type=jnp.float32)  # MXU
        h = h + b_ref[...]                     # (1, dout) broadcasts over rows
        if i < n_layers - 1:
            h = jnp.maximum(h, 0.0)            # fused ReLU on the VPU
            # TODO(synk): dropout implemented as eval-mode identity (no RNG mask)
    o_ref[...] = h.astype(o_ref.dtype)


def _fused_mlp(x, weights_p, biases_p):
    """x: (B, din) unpadded input stream; weights internally lane-padded."""
    B, din = x.shape
    dout = weights_p[-1].shape[1]
    n_layers = len(weights_p)
    kernel = functools.partial(_fused_mlp_kernel, n_layers=n_layers)

    operands = [x]
    for w, b in zip(weights_p, biases_p):
        operands += [w, b]
    out_shape = jax.ShapeDtypeStruct((B, dout), x.dtype)

    if B < _GRID_THRESHOLD:
        # Single grid-less invocation: full-array blocks (always legal),
        # everything fits VMEM trivially at these sizes.
        in_specs = [pl.BlockSpec(op.shape, lambda: (0, 0)) for op in operands]
        return pl.pallas_call(
            kernel,
            out_shape=out_shape,
            in_specs=in_specs,
            out_specs=pl.BlockSpec((B, dout), lambda: (0, 0)),
        )(*operands)

    # Gridded path: >= 2 "parallel" steps (v7x has 2 TensorCores), tiles of up
    # to _BATCH_TILE rows; the partial last block is handled by Pallas.
    n_steps = max(2, _cdiv(B, _BATCH_TILE))
    tm = _round_up(_cdiv(B, n_steps), _SUBLANE)

    def vmem_bytes(t):
        param_b = sum(w.size + b.size for w, b in zip(weights_p, biases_p)) * 4
        stream_b = 2 * t * (din + dout) * 4           # double-buffered in/out tiles
        hidden_p = max(w.shape[1] for w in weights_p)
        temp_b = 2 * t * hidden_p * 4                 # live per-layer temporaries
        return param_b + stream_b + temp_b

    while vmem_bytes(tm) > _VMEM_BUDGET and tm > _SUBLANE:
        tm = max(_SUBLANE, _round_up(tm // 2, _SUBLANE))

    in_specs = [pl.BlockSpec((tm, din), lambda i: (i, 0))]
    for w, b in zip(weights_p, biases_p):
        in_specs += [pl.BlockSpec(w.shape, lambda i: (0, 0)),
                     pl.BlockSpec(b.shape, lambda i: (0, 0))]

    return pl.pallas_call(
        kernel,
        out_shape=out_shape,
        grid=(_cdiv(B, tm),),
        in_specs=in_specs,
        out_specs=pl.BlockSpec((tm, dout), lambda i: (i, 0)),
        compiler_params=pltpu.CompilerParams(
            dimension_semantics=("parallel",)),
    )(*operands)


class DecoderParams:
    """Deterministic parameter init mirroring nn.Linear defaults.

    Stores the unpadded parameters (for the reference check) and copies whose
    *internal* hidden dims are zero-padded to 128 lanes for the fused kernel.
    The boundary dims (latent_dim in, output_dim out) are streamed unpadded.
    Zero padding keeps the math exact (padded lanes stay zero through ReLU).
    """

    def __init__(self, latent_dim, output_dim, hidden_dim_list, key):
        dims = [latent_dim] + list(hidden_dim_list) + [output_dim]
        self.latent_dim = latent_dim
        self.output_dim = output_dim
        self.weights = []
        self.biases = []
        self.weights_p = []
        self.biases_p = []
        n = len(dims) - 1
        for li, (din, dout) in enumerate(zip(dims[:-1], dims[1:])):
            key, kw, kb = jax.random.split(key, 3)
            bound = 1.0 / float(din) ** 0.5
            w = jax.random.uniform(kw, (din, dout), jnp.float32,
                                   minval=-bound, maxval=bound)
            b = jax.random.uniform(kb, (dout,), jnp.float32,
                                   minval=-bound, maxval=bound)
            self.weights.append(w)
            self.biases.append(b)
            din_p = din if li == 0 else _round_up(din, _LANE)
            dout_p = dout if li == n - 1 else _round_up(dout, _LANE)
            w_p = jnp.pad(w, ((0, din_p - din), (0, dout_p - dout)))
            b_p = jnp.pad(b, (0, dout_p - dout)).reshape(1, dout_p)
            self.weights_p.append(w_p)
            self.biases_p.append(b_p)
        self.n_layers = n


def decoder_forward(params: DecoderParams, z):
    """z: (B, latent_dim) -> (B, output_dim). Eval-mode (dropout = identity)."""
    return _fused_mlp(z, params.weights_p, params.biases_p)


def _reference(params: DecoderParams, z):
    h = z
    for i in range(params.n_layers - 1):
        h = jnp.maximum(h @ params.weights[i] + params.biases[i], 0.0)
    return h @ params.weights[-1] + params.biases[-1]


if __name__ == "__main__":
    key = jax.random.PRNGKey(0)
    key, kz, kz2, kp = jax.random.split(key, 4)

    latent_dim = 8
    hidden_dim_list = [32, 32]
    output_dim = 16
    params = DecoderParams(latent_dim, output_dim, hidden_dim_list, kp)

    # Small batch: grid-less path.
    batch = 2
    z = jax.random.normal(kz, (batch, latent_dim), jnp.float32)
    out = decoder_forward(params, z)
    jax.block_until_ready(out)
    ref = _reference(params, z)
    assert out.shape == (batch, output_dim)
    assert jnp.allclose(out, ref, atol=1e-5, rtol=1e-5)

    # Larger batch (not a tile multiple): gridded path with a partial last block.
    batch2 = 300
    z2 = jax.random.normal(kz2, (batch2, latent_dim), jnp.float32)
    out2 = decoder_forward(params, z2)
    jax.block_until_ready(out2)
    ref2 = _reference(params, z2)
    assert out2.shape == (batch2, output_dim)
    assert jnp.allclose(out2, ref2, atol=1e-5, rtol=1e-5)

    print("KERNEL_OK")
</pallas_src>

<mosaic_0001>
module attributes {stable_mosaic.version = 11 : i64} {
  func.func @_fused_mlp_kernel(%arg0: memref<2x8xf32, #tpu.memory_space<vmem>>, %arg1: memref<8x128xf32, #tpu.memory_space<vmem>>, %arg2: memref<1x128xf32, #tpu.memory_space<vmem>>, %arg3: memref<128x128xf32, #tpu.memory_space<vmem>>, %arg4: memref<1x128xf32, #tpu.memory_space<vmem>>, %arg5: memref<128x16xf32, #tpu.memory_space<vmem>>, %arg6: memref<1x16xf32, #tpu.memory_space<vmem>>, %arg7: memref<2x16xf32, #tpu.memory_space<vmem>>) attributes {dimension_semantics = [], scalar_prefetch = 0 : i64, scratch_operands = 0 : i64, tpu.core_type = #tpu.core_type<tc>} {
    %c0 = arith.constant 0 : index
    %c0_0 = arith.constant 0 : index
    %0 = vector.load %arg0[%c0, %c0_0] : memref<2x8xf32, #tpu.memory_space<vmem>>, vector<2x8xf32>
    %c0_1 = arith.constant 0 : index
    %c0_2 = arith.constant 0 : index
    %1 = vector.load %arg1[%c0_1, %c0_2] : memref<8x128xf32, #tpu.memory_space<vmem>>, vector<8x128xf32>
    %cst = arith.constant dense<0.000000e+00> : vector<2x128xf32>
    %2 = tpu.matmul %0, %1, %cst {dimension_numbers = #tpu.dot_dimension_numbers<[1], [0], [0], [1], [0, 0, 1, 1], [], []>} : vector<2x8xf32>, vector<8x128xf32>, vector<2x128xf32> -> vector<2x128xf32>
    %c0_3 = arith.constant 0 : index
    %c0_4 = arith.constant 0 : index
    %3 = vector.load %arg2[%c0_3, %c0_4] : memref<1x128xf32, #tpu.memory_space<vmem>>, vector<1x128xf32>
    %4 = vector.broadcast %3 : vector<1x128xf32> to vector<2x128xf32>
    %5 = arith.addf %2, %4 : vector<2x128xf32>
    %cst_5 = arith.constant 0.000000e+00 : f32
    %6 = vector.broadcast %cst_5 : f32 to vector<2x128xf32>
    %7 = arith.maximumf %5, %6 : vector<2x128xf32>
    %c0_6 = arith.constant 0 : index
    %c0_7 = arith.constant 0 : index
    %8 = vector.load %arg3[%c0_6, %c0_7] : memref<128x128xf32, #tpu.memory_space<vmem>>, vector<128x128xf32>
    %cst_8 = arith.constant dense<0.000000e+00> : vector<2x128xf32>
    %9 = tpu.matmul %7, %8, %cst_8 {dimension_numbers = #tpu.dot_dimension_numbers<[1], [0], [0], [1], [0, 0, 1, 1], [], []>} : vector<2x128xf32>, vector<128x128xf32>, vector<2x128xf32> -> vector<2x128xf32>
    %c0_9 = arith.constant 0 : index
    %c0_10 = arith.constant 0 : index
    %10 = vector.load %arg4[%c0_9, %c0_10] : memref<1x128xf32, #tpu.memory_space<vmem>>, vector<1x128xf32>
    %11 = vector.broadcast %10 : vector<1x128xf32> to vector<2x128xf32>
    %12 = arith.addf %9, %11 : vector<2x128xf32>
    %cst_11 = arith.constant 0.000000e+00 : f32
    %13 = vector.broadcast %cst_11 : f32 to vector<2x128xf32>
    %14 = arith.maximumf %12, %13 : vector<2x128xf32>
    %c0_12 = arith.constant 0 : index
    %c0_13 = arith.constant 0 : index
    %15 = vector.load %arg5[%c0_12, %c0_13] : memref<128x16xf32, #tpu.memory_space<vmem>>, vector<128x16xf32>
    %cst_14 = arith.constant dense<0.000000e+00> : vector<2x16xf32>
    %16 = tpu.matmul %14, %15, %cst_14 {dimension_numbers = #tpu.dot_dimension_numbers<[1], [0], [0], [1], [0, 0, 1, 1], [], []>} : vector<2x128xf32>, vector<128x16xf32>, vector<2x16xf32> -> vector<2x16xf32>
    %c0_15 = arith.constant 0 : index
    %c0_16 = arith.constant 0 : index
    %17 = vector.load %arg6[%c0_15, %c0_16] : memref<1x16xf32, #tpu.memory_space<vmem>>, vector<1x16xf32>
    %18 = vector.broadcast %17 : vector<1x16xf32> to vector<2x16xf32>
    %19 = arith.addf %16, %18 : vector<2x16xf32>
    %c0_17 = arith.constant 0 : index
    %c0_18 = arith.constant 0 : index
    %20 = vector.load %arg7[%c0_17, %c0_18] : memref<2x16xf32, #tpu.memory_space<vmem>>, vector<2x16xf32>
    tpu.vector_store %arg7[%c0_17, %c0_18], %19 {strides = array<i32>} : memref<2x16xf32, #tpu.memory_space<vmem>>, vector<2x16xf32>,
    return
  }
}

</mosaic_0001>

<llo_original>
// kernel: tpu_custom_call.1
$region0: #{tpu_custom_call.1}
  #allocation0 [shape = 'u32[]', space=smem, size = 0x4, offset = 0x4, fixed_abs, tag = 'smem constant byte address 0x4 - core index']
  #allocation1 [shape = 'u32[144,128]{1,0:T(1,128)}', space=vmem, size = 0x12000, scoped, tag = 'internal scratch']
  %s0 = inlined_call_operand.vmem [shape: f32[2,8], index: 0, kind: input, shape index: {}]
  %s1 = inlined_call_operand.vmem [shape: f32[8,128], index: 1, kind: input, shape index: {}]
  %s2 = inlined_call_operand.vmem [shape: f32[1,128], index: 2, kind: input, shape index: {}]
  %s3 = inlined_call_operand.vmem [shape: f32[128,128], index: 3, kind: input, shape index: {}]
  %s4 = inlined_call_operand.vmem [shape: f32[1,128], index: 4, kind: input, shape index: {}]
  %s5 = inlined_call_operand.vmem [shape: f32[128,16], index: 5, kind: input, shape index: {}]
  %s6 = inlined_call_operand.vmem [shape: f32[1,16], index: 6, kind: input, shape index: {}]
  %s7 = inlined_call_operand.hbm [shape: f32[2,16], index: 7, kind: output, shape index: {}]
  %s8 = sld [smem:[#allocation0]]
  $region38: #{tpu_custom_call.1} parent=0
    _
  %s10 = ssub.s32 1, %s8
  %s11 = scalar_select 0, %s10, %s8
  $region1: #{tpu_custom_call.1} parent=0
    #allocation2 [shape = 'u8[1024]{0}', space=vmem, size = 0x400, scoped, tag = 'output window, operand 0, single buffered']
    #allocation3 [shape = 's32[1]{0}', space=sflag, size = 0x4, scoped, tag = 'scoped memory for tpu_custom_call.1']
    %12 = vsyncpa [#allocation3], 0
    // Predicated region
    $region2: #{tpu_custom_call.1} parent=1 // pred_check
      _
    $region3: #{tpu_custom_call.1} parent=1 // pred_check_branch
      %14 = sbr.rel (0) target = $region5
    $region4: #{tpu_custom_call.1} parent=1 // pred_region
      _
    $region5: #{tpu_custom_call.1} parent=1 // pred_fallthru
      _
    // Predicated region
    $region6: #{tpu_custom_call.1} parent=1 // pred_check
      _
    $region7: #{tpu_custom_call.1} parent=1 // pred_check_branch
      %16 = sbr.rel (0) target = $region9
    $region8: #{tpu_custom_call.1} parent=1 // pred_region
      _
    $region9: #{tpu_custom_call.1} parent=1 // pred_fallthru
      _
    // Predicated region
    $region10: #{tpu_custom_call.1} parent=1 // pred_check
      _
    $region11: #{tpu_custom_call.1} parent=1 // pred_check_branch
      %18 = sbr.rel (0) target = $region13
    $region12: #{tpu_custom_call.1} parent=1 // pred_region
      _
    $region13: #{tpu_custom_call.1} parent=1 // pred_fallthru
      _
    // Predicated region
    $region14: #{tpu_custom_call.1} parent=1 // pred_check
      _
    $region15: #{tpu_custom_call.1} parent=1 // pred_check_branch
      %20 = sbr.rel (0) target = $region17
    $region16: #{tpu_custom_call.1} parent=1 // pred_region
      _
    $region17: #{tpu_custom_call.1} parent=1 // pred_fallthru
      _
    // Predicated region
    $region18: #{tpu_custom_call.1} parent=1 // pred_check
      _
    $region19: #{tpu_custom_call.1} parent=1 // pred_check_branch
      %22 = sbr.rel (0) target = $region21
    $region20: #{tpu_custom_call.1} parent=1 // pred_region
      _
    $region21: #{tpu_custom_call.1} parent=1 // pred_fallthru
      _
    // Predicated region
    $region22: #{tpu_custom_call.1} parent=1 // pred_check
      _
    $region23: #{tpu_custom_call.1} parent=1 // pred_check_branch
      %24 = sbr.rel (0) target = $region25
    $region24: #{tpu_custom_call.1} parent=1 // pred_region
      _
    $region25: #{tpu_custom_call.1} parent=1 // pred_fallthru
      _
    // Predicated region
    $region26: #{tpu_custom_call.1} parent=1 // pred_check
      _
    $region27: #{tpu_custom_call.1} parent=1 // pred_check_branch
      %26 = sbr.rel (0) target = $region29
    $region28: #{tpu_custom_call.1} parent=1 // pred_region
      _
    $region29: #{tpu_custom_call.1} parent=1 // pred_fallthru
      _
    %v27 = vld [vmem:[%s0] sm:$0x3]
    %v28 = vld [vmem:[%s1] sm:$0xff]
    %v29 = vld [vmem:[%s2] sm:$0x1]
    %v31 = vlaneseq
    %v32 = vshrl.u32 %v31, 7
    %v33 = vsub.s32 0, %v32
    %v34 = vrot.slane %v29, %v33
    %vm36 = vcmask 64512
    %v38 = vsel %vm36, %v27, 0
    %40 = vmatprep.subr.mxu0 0.0
    %41 = vmatpush1.msra.mxu0 0.0
    %42 = vmatprep.subr.mxu0 0.0
    %43 = vmatpush1.msra.mxu0 0.0
    %44 = vmatprep.subr.mxu0 0.0
    %45 = vmatpush1.msra.mxu0 0.0
    %46 = vmatprep.subr.mxu0 0.0
    %47 = vmatpush1.msra.mxu0 0.0
    %48 = vmatprep.subr.mxu0 0.0
    %49 = vmatpush1.msra.mxu0 0.0
    %50 = vmatprep.subr.mxu0 0.0
    %51 = vmatpush1.msra.mxu0 0.0
    %52 = vmatprep.subr.mxu0 0.0
    %53 = vmatpush1.msra.mxu0 0.0
    %54 = vmatprep.subr.mxu0 0.0
    %55 = vmatpush1.msra.mxu0 0.0
    %56 = vmatprep.subr.mxu0 0.0
    %57 = vmatpush1.msra.mxu0 0.0
    %58 = vmatprep.subr.mxu0 0.0
    %59 = vmatpush1.msra.mxu0 0.0
    %60 = vmatprep.subr.mxu0 0.0
    %61 = vmatpush1.msra.mxu0 0.0
    %62 = vmatprep.subr.mxu0 0.0
    %63 = vmatpush1.msra.mxu0 0.0
    %64 = vmatprep.subr.mxu0 0.0
    %65 = vmatpush1.msra.mxu0 0.0
    %66 = vmatprep.subr.mxu0 0.0
    %67 = vmatpush1.msra.mxu0 0.0
    %68 = vmatprep.subr.mxu0 0.0
    %69 = vmatpush1.msra.mxu0 0.0
    %70 = vmatprep.subr.mxu0 0.0
    %71 = vmatpush1.msra.mxu0 %v28
    %72 = vmatprep.subr.mxu0 0.0
    %73 = vmatpush2.msra.mxu0 0.0
    %74 = vmatprep.subr.mxu0 0.0
    %75 = vmatpush2.msra.mxu0 0.0
    %76 = vmatprep.subr.mxu0 0.0
    %77 = vmatpush2.msra.mxu0 0.0
    %78 = vmatprep.subr.mxu0 0.0
    %79 = vmatpush2.msra.mxu0 0.0
    %80 = vmatprep.subr.mxu0 0.0
    %81 = vmatpush2.msra.mxu0 0.0
    %82 = vmatprep.subr.mxu0 0.0
    %83 = vmatpush2.msra.mxu0 0.0
    %84 = vmatprep.subr.mxu0 0.0
    %85 = vmatpush2.msra.mxu0 0.0
    %86 = vmatprep.subr.mxu0 0.0
    %87 = vmatpush2.msra.mxu0 0.0
    %88 = vmatprep.subr.mxu0 0.0
    %89 = vmatpush2.msra.mxu0 0.0
    %90 = vmatprep.subr.mxu0 0.0
    %91 = vmatpush2.msra.mxu0 0.0
    %92 = vmatprep.subr.mxu0 0.0
    %93 = vmatpush2.msra.mxu0 0.0
    %94 = vmatprep.subr.mxu0 0.0
    %95 = vmatpush2.msra.mxu0 0.0
    %96 = vmatprep.subr.mxu0 0.0
    %97 = vmatpush2.msra.mxu0 0.0
    %98 = vmatprep.subr.mxu0 0.0
    %99 = vmatpush2.msra.mxu0 0.0
    %100 = vmatprep.subr.mxu0 0.0
    %101 = vmatpush2.msra.mxu0 0.0
    %102 = vmatprep.subr.mxu0 0.0
    %103 = vmatpush2.msra.mxu0 0.0
    %104 = vmatprep.mubr.f32.mxu0 0.0
    %105 = vmatmul.mubr.f32.gmra.mxu0 %v38
    %v106 = vpop.f32.mrf.mxu0
    %v107 = vadd.f32 %v34, %v106
    %v108 = vpop.f32.mrf.mxu0
    %109 = vdwg.mxu0
    %v110 = vmax.f32 %v107, 0.0
    %v111 = vld [vmem:[%s3] sm:$0xff]
    %v112 = vld [vmem:[%s3 + $0x8] sm:$0xff]
    %v113 = vld [vmem:[%s3 + $0x10] sm:$0xff]
    %v114 = vld [vmem:[%s3 + $0x18] sm:$0xff]
    %v115 = vld [vmem:[%s3 + $0x20] sm:$0xff]
    %v116 = vld [vmem:[%s3 + $0x28] sm:$0xff]
    %v117 = vld [vmem:[%s3 + $0x30] sm:$0xff]
    %v118 = vld [vmem:[%s3 + $0x38] sm:$0xff]
    %v119 = vld [vmem:[%s3 + $0x40] sm:$0xff]
    %v120 = vld [vmem:[%s3 + $0x48] sm:$0xff]
    %v121 = vld [vmem:[%s3 + $0x50] sm:$0xff]
    %v122 = vld [vmem:[%s3 + $0x58] sm:$0xff]
    %v123 = vld [vmem:[%s3 + $0x60] sm:$0xff]
    %v124 = vld [vmem:[%s3 + $0x68] sm:$0xff]
    %v125 = vld [vmem:[%s3 + $0x70] sm:$0xff]
    %v126 = vld [vmem:[%s3 + $0x78] sm:$0xff]
    %v127 = vld [vmem:[%s4] sm:$0x1]
    %v129 = vlaneseq
    %v130 = vshrl.u32 %v129, 7
    %v131 = vsub.s32 0, %v130
    %v132 = vrot.slane %v127, %v131
    %134 = vmatprep.subr.mxu0 0.0
    %135 = vmatpush1.msra.mxu0 %v126
    %136 = vmatprep.subr.mxu0 0.0
    %137 = vmatpush1.msra.mxu0 %v125
    %138 = vmatprep.subr.mxu0 0.0
    %139 = vmatpush1.msra.mxu0 %v124
    %140 = vmatprep.subr.mxu0 0.0
    %141 = vmatpush1.msra.mxu0 %v123
    %142 = vmatprep.subr.mxu0 0.0
    %143 = vmatpush1.msra.mxu0 %v122
    %144 = vmatprep.subr.mxu0 0.0
    %145 = vmatpush1.msra.mxu0 %v121
    %146 = vmatprep.subr.mxu0 0.0
    %147 = vmatpush1.msra.mxu0 %v120
    %148 = vmatprep.subr.mxu0 0.0
    %149 = vmatpush1.msra.mxu0 %v119
    %150 = vmatprep.subr.mxu0 0.0
    %151 = vmatpush1.msra.mxu0 %v118
    %152 = vmatprep.subr.mxu0 0.0
    %153 = vmatpush1.msra.mxu0 %v117
    %154 = vmatprep.subr.mxu0 0.0
    %155 = vmatpush1.msra.mxu0 %v116
    %156 = vmatprep.subr.mxu0 0.0
    %157 = vmatpush1.msra.mxu0 %v115
    %158 = vmatprep.subr.mxu0 0.0
    %159 = vmatpush1.msra.mxu0 %v114
    %160 = vmatprep.subr.mxu0 0.0
    %161 = vmatpush1.msra.mxu0 %v113
    %162 = vmatprep.subr.mxu0 0.0
    %163 = vmatpush1.msra.mxu0 %v112
    %164 = vmatprep.subr.mxu0 0.0
    %165 = vmatpush1.msra.mxu0 %v111
    %166 = vmatprep.subr.mxu0 0.0
    %167 = vmatpush2.msra.mxu0 0.0
    %168 = vmatprep.subr.mxu0 0.0
    %169 = vmatpush2.msra.mxu0 0.0
    %170 = vmatprep.subr.mxu0 0.0
    %171 = vmatpush2.msra.mxu0 0.0
    %172 = vmatprep.subr.mxu0 0.0
    %173 = vmatpush2.msra.mxu0 0.0
    %174 = vmatprep.subr.mxu0 0.0
    %175 = vmatpush2.msra.mxu0 0.0
    %176 = vmatprep.subr.mxu0 0.0
    %177 = vmatpush2.msra.mxu0 0.0
    %178 = vmatprep.subr.mxu0 0.0
    %179 = vmatpush2.msra.mxu0 0.0
    %180 = vmatprep.subr.mxu0 0.0
    %181 = vmatpush2.msra.mxu0 0.0
    %182 = vmatprep.subr.mxu0 0.0
    %183 = vmatpush2.msra.mxu0 0.0
    %184 = vmatprep.subr.mxu0 0.0
    %185 = vmatpush2.msra.mxu0 0.0
    %186 = vmatprep.subr.mxu0 0.0
    %187 = vmatpush2.msra.mxu0 0.0
    %188 = vmatprep.subr.mxu0 0.0
    %189 = vmatpush2.msra.mxu0 0.0
    %190 = vmatprep.subr.mxu0 0.0
    %191 = vmatpush2.msra.mxu0 0.0
    %192 = vmatprep.subr.mxu0 0.0
    %193 = vmatpush2.msra.mxu0 0.0
    %194 = vmatprep.subr.mxu0 0.0
    %195 = vmatpush2.msra.mxu0 0.0
    %196 = vmatprep.subr.mxu0 0.0
    %197 = vmatpush2.msra.mxu0 0.0
    %198 = vmatprep.mubr.f32.mxu0 0.0
    %199 = vmatmul.mubr.f32.gmra.mxu0 %v110
    %v200 = vpop.f32.mrf.mxu0
    %v201 = vadd.f32 %v132, %v200
    %v202 = vpop.f32.mrf.mxu0
    %203 = vdwg.mxu0
    %v204 = vmax.f32 %v201, 0.0
    %v205 = vld [vmem:[%s5] sm:$0xff]
    %v206 = vld [vmem:[%s5 + $0x8] sm:$0xff]
    %v207 = vld [vmem:[%s5 + $0x10] sm:$0xff]
    %v208 = vld [vmem:[%s5 + $0x18] sm:$0xff]
    %v209 = vld [vmem:[%s5 + $0x20] sm:$0xff]
    %v210 = vld [vmem:[%s5 + $0x28] sm:$0xff]
    %v211 = vld [vmem:[%s5 + $0x30] sm:$0xff]
    %v212 = vld [vmem:[%s5 + $0x38] sm:$0xff]
    %v213 = vld [vmem:[%s5 + $0x40] sm:$0xff]
    %v214 = vld [vmem:[%s5 + $0x48] sm:$0xff]
    %v215 = vld [vmem:[%s5 + $0x50] sm:$0xff]
    %v216 = vld [vmem:[%s5 + $0x58] sm:$0xff]
    %v217 = vld [vmem:[%s5 + $0x60] sm:$0xff]
    %v218 = vld [vmem:[%s5 + $0x68] sm:$0xff]
    %v219 = vld [vmem:[%s5 + $0x70] sm:$0xff]
    %v220 = vld [vmem:[%s5 + $0x78] sm:$0xff]
    %v221 = vld [vmem:[%s6] sm:$0x1]
    %v223 = vlaneseq
    %v224 = vshrl.u32 %v223, 7
    %v225 = vsub.s32 0, %v224
    %v226 = vrot.slane %v221, %v225
    %228 = vmatprep.subr.mxu0 0.0
    %229 = vmatpush1.msra.mxu0 %v220
    %230 = vmatprep.subr.mxu0 0.0
    %231 = vmatpush1.msra.mxu0 %v219
    %232 = vmatprep.subr.mxu0 0.0
    %233 = vmatpush1.msra.mxu0 %v218
    %234 = vmatprep.subr.mxu0 0.0
    %235 = vmatpush1.msra.mxu0 %v217
    %236 = vmatprep.subr.mxu0 0.0
    %237 = vmatpush1.msra.mxu0 %v216
    %238 = vmatprep.subr.mxu0 0.0
    %239 = vmatpush1.msra.mxu0 %v215
    %240 = vmatprep.subr.mxu0 0.0
    %241 = vmatpush1.msra.mxu0 %v214
    %242 = vmatprep.subr.mxu0 0.0
    %243 = vmatpush1.msra.mxu0 %v213
    %244 = vmatprep.subr.mxu0 0.0
    %245 = vmatpush1.msra.mxu0 %v212
    %246 = vmatprep.subr.mxu0 0.0
    %247 = vmatpush1.msra.mxu0 %v211
    %248 = vmatprep.subr.mxu0 0.0
    %249 = vmatpush1.msra.mxu0 %v210
    %250 = vmatprep.subr.mxu0 0.0
    %251 = vmatpush1.msra.mxu0 %v209
    %252 = vmatprep.subr.mxu0 0.0
    %253 = vmatpush1.msra.mxu0 %v208
    %254 = vmatprep.subr.mxu0 0.0
    %255 = vmatpush1.msra.mxu0 %v207
    %256 = vmatprep.subr.mxu0 0.0
    %257 = vmatpush1.msra.mxu0 %v206
    %258 = vmatprep.subr.mxu0 0.0
    %259 = vmatpush1.msra.mxu0 %v205
    %260 = vmatprep.subr.mxu0 0.0
    %261 = vmatpush2.msra.mxu0 0.0
    %262 = vmatprep.subr.mxu0 0.0
    %263 = vmatpush2.msra.mxu0 0.0
    %264 = vmatprep.subr.mxu0 0.0
    %265 = vmatpush2.msra.mxu0 0.0
    %266 = vmatprep.subr.mxu0 0.0
    %267 = vmatpush2.msra.mxu0 0.0
    %268 = vmatprep.subr.mxu0 0.0
    %269 = vmatpush2.msra.mxu0 0.0
    %270 = vmatprep.subr.mxu0 0.0
    %271 = vmatpush2.msra.mxu0 0.0
    %272 = vmatprep.subr.mxu0 0.0
    %273 = vmatpush2.msra.mxu0 0.0
    %274 = vmatprep.subr.mxu0 0.0
    %275 = vmatpush2.msra.mxu0 0.0
    %276 = vmatprep.subr.mxu0 0.0
    %277 = vmatpush2.msra.mxu0 0.0
    %278 = vmatprep.subr.mxu0 0.0
    %279 = vmatpush2.msra.mxu0 0.0
    %280 = vmatprep.subr.mxu0 0.0
    %281 = vmatpush2.msra.mxu0 0.0
    %282 = vmatprep.subr.mxu0 0.0
    %283 = vmatpush2.msra.mxu0 0.0
    %284 = vmatprep.subr.mxu0 0.0
    %285 = vmatpush2.msra.mxu0 0.0
    %286 = vmatprep.subr.mxu0 0.0
    %287 = vmatpush2.msra.mxu0 0.0
    %288 = vmatprep.subr.mxu0 0.0
    %289 = vmatpush2.msra.mxu0 0.0
    %290 = vmatprep.subr.mxu0 0.0
    %291 = vmatpush2.msra.mxu0 0.0
    %292 = vmatprep.mubr.f32.mxu0 0.0
    %293 = vmatmul.mubr.f32.gmra.mxu0 %v204
    %v294 = vpop.f32.mrf.mxu0
    %v295 = vadd.f32 %v226, %v294
    %v296 = vpop.f32.mrf.mxu0
    %297 = vdwg.mxu0
    %vm298 = vcmask 123904
    %299 = vst.msk [vmem:[#allocation2] sm:$0x3] %vm298, %v295
    // Predicated region
    $region30: #{tpu_custom_call.1} parent=1 // pred_check
      _
    $region31: #{tpu_custom_call.1} parent=1 // pred_check_branch
      %301 = sbr.rel (0) target = $region33
    $region32: #{tpu_custom_call.1} parent=1 // pred_region
      %s303 = ssub.s32 32, 32
      %304 = vsyncadd [#allocation3], %s303
      %s306 = sshll.u32 [#allocation2], 4
      %s307 = int_to_ptr.vmem [resolvable:$true] %s306
      %309 = dma.vmem_to_hbm [thread:$0]  %s307, 32, %s7, [#allocation3]
    $region33: #{tpu_custom_call.1} parent=1 // pred_fallthru
      _
    // Predicated region
    $region34: #{tpu_custom_call.1} parent=1 // pred_check
      _
    $region35: #{tpu_custom_call.1} parent=1 // pred_check_branch
      %311 = sbr.rel (0) target = $region37
    $region36: #{tpu_custom_call.1} parent=1 // pred_region
      %312 = dma.done [#allocation3], 32
    $region37: #{tpu_custom_call.1} parent=1 // pred_fallthru
      _
    %313 = vsyncpa [#allocation3], 1

</llo_original>
